<compile_context>
chip_gen: v6e
topology: v6e:2x2x1
jax: 0.10.0
libtpu: 0.0.40
codegen_flags: <defaults>
</compile_context>

<pallas_src>
import jax
import jax.numpy as jnp
from jax import lax
from jax.experimental import pallas as pl
from jax.experimental.pallas import tpu as pltpu

ODE_FEATURE_DIM = 32
NUM_STEPS = 64          # fixed-step Heun steps over [t0, t1]
LANE = 128
MAX_TILE_B = 2048       # rows per batch tile (review: 1024-2048 is the sweet spot)


def _round_up(x, m):
    return ((x + m - 1) // m) * m


# ---------------------------------------------------------------------------
# Pallas kernel: one fused matmul + bias per batch tile.
# ---------------------------------------------------------------------------
def _fused_linear_kernel(x_ref, w_ref, b_ref, out_ref):
    # x_ref  : [TB, dim_in]   VMEM
    # w_ref  : [dim_in, n_pad] VMEM (constant across the grid)
    # b_ref  : [1, n_pad]      VMEM (constant across the grid)
    # out_ref: [TB, n_pad]     VMEM (lane-dense store)
    out = jnp.dot(x_ref[...].astype(jnp.float32), w_ref[...],
                  preferred_element_type=jnp.float32) + b_ref[...]
    out_ref[...] = out.astype(out_ref.dtype)


# ---------------------------------------------------------------------------
# Wrapper-side (plain JAX) algebra: collapse the Heun integration and fuse the
# whole model into a single (dim_in x n_pad) weight + (1 x n_pad) bias.
# ---------------------------------------------------------------------------
def _fuse_model(params, integration_time, num_steps, n_pad):
    f32 = jnp.float32
    D = params["w_f"].shape[0]

    t0 = integration_time[0].astype(f32)
    t1 = integration_time[1].astype(f32)
    dt = (t1 - t0) / f32(num_steps)

    w_b = params["w_b"].astype(f32)

    # Affine form of the ODE RHS:  f(t, h) = h @ A + t * v + c.
    A = params["w_f"].astype(f32) @ w_b                                   # [D, D]
    v = params["w_t"].astype(f32) @ w_b                                   # [1, D]
    c = (params["b_t"].astype(f32) + params["b_f"].astype(f32)) @ w_b \
        + params["b_b"].astype(f32)                                       # [1, D]

    # One Heun (explicit trapezoidal) step is affine:
    #   h' = h @ M1 + t * U1 + R1 ;   t' = t + dt
    eye = jnp.eye(D, dtype=f32)
    A2 = A @ A
    hdt2 = 0.5 * dt * dt
    M1 = eye + dt * A + hdt2 * A2
    U1 = dt * v + hdt2 * (v @ A)
    R1 = dt * c + hdt2 * v + hdt2 * (c @ A)

    # Collapse `num_steps` steps by binary exponentiation of the affine map
    # (trace-time unrolled; ~3*log2(N) tiny 32x32 matmuls, done ONCE here, not
    #  per batch tile).
    def compose(a, b):
        # apply map `a` (covering `na` steps) first, then map `b`
        ma, ua, ra, na = a
        mb, ub, rb, nb = b
        m = ma @ mb
        u = ua @ mb + ub
        r = ra @ mb + (f32(na) * dt) * ub + rb
        return m, u, r, na + nb

    zero_row = jnp.zeros((1, D), f32)
    res = (eye, zero_row, zero_row, 0)
    have_res = False
    base = (M1, U1, R1, 1)
    n = num_steps
    while n > 0:
        if n & 1:
            res = base if not have_res else compose(res, base)
            have_res = True
        n >>= 1
        if n > 0:
            base = compose(base, base)
    M_tot, U_tot, R_tot, _ = res

    # Pad fc weights to a lane-dense multiple of 128 (unmasked output stores).
    n_classes = params["w_fc"].shape[1]
    w_fc = params["w_fc"].astype(f32)
    b_fc = params["b_fc"].astype(f32)
    if n_pad != n_classes:
        w_fc = jnp.pad(w_fc, ((0, 0), (0, n_pad - n_classes)))
        b_fc = jnp.pad(b_fc, ((0, 0), (0, n_pad - n_classes)))

    # Fold the whole model:  out = x @ W_total + b_total.
    w_total = params["w_in"].astype(f32) @ (M_tot @ w_fc)                 # [dim_in, n_pad]
    h_bias = params["b_in"].astype(f32) @ M_tot + t0 * U_tot + R_tot      # [1, D]
    b_total = h_bias @ w_fc + b_fc                                        # [1, n_pad]
    return w_total, b_total


def neural_ode_forward(x, params, integration_time, *,
                       num_steps=NUM_STEPS, tile_b=None, return_padded=False):
    """Full NeuralODE_Model forward: one batch-tiled fused-matmul Pallas call."""
    B, dim_in = x.shape
    n_classes = params["w_fc"].shape[1]
    n_pad = _round_up(n_classes, LANE)

    # All grid-invariant algebra is done here, once, in plain JAX.
    w_total, b_total = _fuse_model(params, integration_time, num_steps, n_pad)

    # Batch tiling: multiple of 8 rows; for large batches use >=2 tiles so the
    # "parallel" grid axis can feed both TensorCores on v7x.
    bp = _round_up(B, 8)
    if tile_b is None:
        if bp <= 16:
            tile_b = bp
        else:
            tile_b = min(MAX_TILE_B, _round_up(pl.cdiv(bp, 2), 8))
    else:
        tile_b = min(_round_up(tile_b, 8), _round_up(bp, 8))

    grid_b = pl.cdiv(bp, tile_b)
    bp_full = grid_b * tile_b
    x_in = x
    if bp_full != B:
        x_in = jnp.pad(x, ((0, bp_full - B), (0, 0)))

    batch_map = lambda i: (i, 0)
    const_map = lambda i: (0, 0)

    # Advisory cost estimate for the single fused matmul.
    flops = 2 * bp_full * dim_in * n_pad
    bytes_accessed = 4 * (bp_full * dim_in + dim_in * n_pad + n_pad
                          + bp_full * n_pad)
    cost = pl.CostEstimate(flops=int(flops), transcendentals=0,
                           bytes_accessed=int(bytes_accessed))

    out_padded = pl.pallas_call(
        _fused_linear_kernel,
        out_shape=jax.ShapeDtypeStruct((bp_full, n_pad), jnp.float32),
        grid_spec=pltpu.PrefetchScalarGridSpec(
            num_scalar_prefetch=0,
            grid=(grid_b,),
            in_specs=[
                pl.BlockSpec((tile_b, dim_in), batch_map),
                pl.BlockSpec((dim_in, n_pad), const_map),   # VMEM-resident weight
                pl.BlockSpec((1, n_pad), const_map),        # VMEM-resident bias
            ],
            out_specs=pl.BlockSpec((tile_b, n_pad), batch_map),
        ),
        compiler_params=pltpu.CompilerParams(
            dimension_semantics=("parallel",)),             # megacore split on v7x
        cost_estimate=cost,
    )(x_in, w_total, b_total)

    if return_padded:
        # Consumers that can take the lane-dense [B_pad, 128] slab avoid an
        # extra XLA slice pass over the dominant output array.
        return out_padded
    return out_padded[:B, :n_classes]


# ---------------------------------------------------------------------------
# Pure-JAX reference of the same math (stepwise fixed-step Heun).
# ---------------------------------------------------------------------------
def _reference_forward(x, params, integration_time, num_steps=NUM_STEPS):
    h = x @ params["w_in"] + params["b_in"]

    def ode_f(t, hh):
        time_feat = t * params["w_t"] + params["b_t"]
        feat = hh @ params["w_f"] + params["b_f"]
        return (time_feat + feat) @ params["w_b"] + params["b_b"]

    t0, t1 = integration_time[0], integration_time[1]
    dt = (t1 - t0) / num_steps

    def step(i, hh):
        t = t0 + dt * i
        k1 = ode_f(t, hh)
        k2 = ode_f(t + dt, hh + dt * k1)
        return hh + 0.5 * dt * (k1 + k2)

    h = lax.fori_loop(0, num_steps, step, h)
    return h @ params["w_fc"] + params["b_fc"]


def init_params(key, dim_in, n_classes, feature_dim=ODE_FEATURE_DIM):
    """Deterministic parameter init (uniform, PyTorch-Linear-like scaling)."""
    ks = jax.random.split(key, 10)

    def lin(kw, kb, fan_in, fan_out):
        bound = 1.0 / jnp.sqrt(jnp.float32(fan_in))
        w = jax.random.uniform(kw, (fan_in, fan_out), jnp.float32, -bound, bound)
        b = jax.random.uniform(kb, (1, fan_out), jnp.float32, -bound, bound)
        return w, b

    w_in, b_in = lin(ks[0], ks[1], dim_in, feature_dim)        # in_block
    w_t, b_t = lin(ks[2], ks[3], 1, feature_dim)               # model_time
    w_f, b_f = lin(ks[4], ks[5], feature_dim, feature_dim)     # model_feature
    w_b, b_b = lin(ks[6], ks[7], feature_dim, feature_dim)     # model_base
    w_fc, b_fc = lin(ks[8], ks[9], feature_dim, n_classes)     # fc

    return dict(
        w_in=w_in, b_in=b_in,
        w_t=w_t, b_t=b_t,
        w_f=w_f, b_f=b_f,
        w_b=w_b, b_b=b_b,
        w_fc=w_fc, b_fc=b_fc,
    )


if __name__ == "__main__":
    key = jax.random.PRNGKey(0)
    k_x, k_p = jax.random.split(key)

    B, dim_in, n_classes = 8, 16, 10
    x = jax.random.normal(k_x, (B, dim_in), jnp.float32)
    params = init_params(k_p, dim_in, n_classes)
    integration_time = jnp.array([0.0, 1.0], jnp.float32)

    out = jax.block_until_ready(neural_ode_forward(x, params, integration_time))
    ref = jax.block_until_ready(_reference_forward(x, params, integration_time))

    assert out.shape == (B, n_classes)
    assert jnp.allclose(out, ref, atol=1e-3, rtol=1e-3), float(
        jnp.max(jnp.abs(out - ref)))

    print("KERNEL_OK")
</pallas_src>

<mosaic_0001>
module attributes {stable_mosaic.version = 11 : i64} {
  func.func @_fused_linear_kernel(%arg0: i32, %arg1: memref<8x16xf32, #tpu.memory_space<vmem>>, %arg2: memref<16x128xf32, #tpu.memory_space<vmem>>, %arg3: memref<1x128xf32, #tpu.memory_space<vmem>>, %arg4: memref<8x128xf32, #tpu.memory_space<vmem>>) attributes {dimension_semantics = [#tpu.dimension_semantics<parallel>], iteration_bounds = array<i64: 1>, scalar_prefetch = 0 : i64, scratch_operands = 0 : i64, tpu.core_type = #tpu.core_type<tc>, window_params = [{transform_indices = @transform_0, window_bounds = array<i64: 8, 16>}, {pipeline_mode = #tpu.pipeline_mode<synchronous>, transform_indices = @transform_1, window_bounds = array<i64: 16, 128>}, {pipeline_mode = #tpu.pipeline_mode<synchronous>, transform_indices = @transform_2, window_bounds = array<i64: 1, 128>}, {transform_indices = @transform_3, window_bounds = array<i64: 8, 128>}]} {
    %c0 = arith.constant 0 : index
    %c0_0 = arith.constant 0 : index
    %0 = vector.load %arg1[%c0, %c0_0] : memref<8x16xf32, #tpu.memory_space<vmem>>, vector<8x16xf32>
    %c0_1 = arith.constant 0 : index
    %c0_2 = arith.constant 0 : index
    %1 = vector.load %arg2[%c0_1, %c0_2] : memref<16x128xf32, #tpu.memory_space<vmem>>, vector<16x128xf32>
    %cst = arith.constant dense<0.000000e+00> : vector<8x128xf32>
    %2 = tpu.matmul %0, %1, %cst {dimension_numbers = #tpu.dot_dimension_numbers<[1], [0], [0], [1], [0, 0, 1, 1], [], []>} : vector<8x16xf32>, vector<16x128xf32>, vector<8x128xf32> -> vector<8x128xf32>
    %c0_3 = arith.constant 0 : index
    %c0_4 = arith.constant 0 : index
    %3 = vector.load %arg3[%c0_3, %c0_4] : memref<1x128xf32, #tpu.memory_space<vmem>>, vector<1x128xf32>
    %4 = vector.broadcast %3 : vector<1x128xf32> to vector<8x128xf32>
    %5 = arith.addf %2, %4 : vector<8x128xf32>
    %c0_5 = arith.constant 0 : index
    %c0_6 = arith.constant 0 : index
    %6 = vector.load %arg4[%c0_5, %c0_6] : memref<8x128xf32, #tpu.memory_space<vmem>>, vector<8x128xf32>
    tpu.vector_store %arg4[%c0_5, %c0_6], %5 {strides = array<i32>} : memref<8x128xf32, #tpu.memory_space<vmem>>, vector<8x128xf32>,
    return
  }
  func.func @transform_0(%arg0: i32) -> (i32, i32) {
    %c0_i32 = arith.constant 0 : i32
    %c0_i32_0 = arith.constant 0 : i32
    return %arg0, %c0_i32 : i32, i32
  }
  func.func @transform_1(%arg0: i32) -> (i32, i32) {
    %c0_i32 = arith.constant 0 : i32
    %c0_i32_0 = arith.constant 0 : i32
    %c0_i32_1 = arith.constant 0 : i32
    return %c0_i32, %c0_i32_0 : i32, i32
  }
  func.func @transform_2(%arg0: i32) -> (i32, i32) {
    %c0_i32 = arith.constant 0 : i32
    %c0_i32_0 = arith.constant 0 : i32
    %c0_i32_1 = arith.constant 0 : i32
    return %c0_i32, %c0_i32_0 : i32, i32
  }
  func.func @transform_3(%arg0: i32) -> (i32, i32) {
    %c0_i32 = arith.constant 0 : i32
    %c0_i32_0 = arith.constant 0 : i32
    return %arg0, %c0_i32 : i32, i32
  }
}

</mosaic_0001>

<llo_original>
// kernel: tpu_custom_call.1
$region0: #{tpu_custom_call.1}
  #allocation0 [shape = 'u32[]', space=smem, size = 0x4, offset = 0x4, fixed_abs, tag = 'smem constant byte address 0x4 - core index']
  #allocation1 [shape = 'u32[144,128]{1,0:T(1,128)}', space=vmem, size = 0x12000, scoped, tag = 'internal scratch']
  %s0 = inlined_call_operand.hbm [shape: f32[8,16], index: 0, kind: input, shape index: {}]
  %s1 = inlined_call_operand.hbm [shape: f32[16,128], index: 1, kind: input, shape index: {}]
  %s2 = inlined_call_operand.vmem [shape: f32[1,128], index: 2, kind: input, shape index: {}]
  %s3 = inlined_call_operand.hbm [shape: f32[8,128], index: 3, kind: output, shape index: {}]
  %s4 = sld [smem:[#allocation0]]
  $region30: #{tpu_custom_call.1} parent=0
    _
  %s6 = ssub.s32 1, %s4
  %s7 = scalar_select 0, %s6, %s4
  $region1: #{tpu_custom_call.1} parent=0
    #allocation2 [shape = 'u8[4096]{0}', space=vmem, size = 0x1000, scoped, tag = 'input window, operand 0, single buffered']
    #allocation3 [shape = 's32[1]{0}', space=sflag, size = 0x4, scoped, tag = 'scoped memory for tpu_custom_call.1']
    #allocation4 [shape = 's32[1]{0}', space=sflag, size = 0x4, scoped, tag = 'scoped memory for tpu_custom_call.1']
    #allocation5 [shape = 'u8[8192]{0}', space=vmem, size = 0x2000, scoped, tag = 'input window, operand 1, single buffered']
    #allocation6 [shape = 's32[1]{0}', space=sflag, size = 0x4, scoped, tag = 'scoped memory for tpu_custom_call.1']
    #allocation7 [shape = 'u8[4096]{0}', space=vmem, size = 0x1000, scoped, tag = 'output window, operand 0, single buffered']
    %8 = vsyncpa [#allocation3], 0
    %9 = vsyncpa [#allocation6], 0
    %10 = vsyncpa [#allocation4], 0
    // Predicated region
    $region2: #{tpu_custom_call.1} parent=1 // pred_check
      _
    $region3: #{tpu_custom_call.1} parent=1 // pred_check_branch
      %12 = sbr.rel (0) target = $region5
    $region4: #{tpu_custom_call.1} parent=1 // pred_region
      %s14 = ssub.s32 128, 128
      %15 = vsyncadd [#allocation3], %s14
      %s17 = sshll.u32 [#allocation2], 4
      %s18 = int_to_ptr.vmem [resolvable:$true] %s17
      %20 = dma.hbm_to_vmem [thread:$0]  %s0, 128, %s18, [#allocation3]
    $region5: #{tpu_custom_call.1} parent=1 // pred_fallthru
      _
    // Predicated region
    $region6: #{tpu_custom_call.1} parent=1 // pred_check
      _
    $region7: #{tpu_custom_call.1} parent=1 // pred_check_branch
      %22 = sbr.rel (0) target = $region9
    $region8: #{tpu_custom_call.1} parent=1 // pred_region
      %s24 = ssub.s32 256, 256
      %25 = vsyncadd [#allocation6], %s24
      %s26 = sshll.u32 [#allocation5], 4
      %s27 = int_to_ptr.vmem [resolvable:$true] %s26
      %32 = dma.hbm_to_vmem [thread:$0]  %s1, 256, %s27, [#allocation6], 128, 128, 8
    $region9: #{tpu_custom_call.1} parent=1 // pred_fallthru
      _
    // Predicated region
    $region10: #{tpu_custom_call.1} parent=1 // pred_check
      _
    $region11: #{tpu_custom_call.1} parent=1 // pred_check_branch
      %34 = sbr.rel (0) target = $region13
    $region12: #{tpu_custom_call.1} parent=1 // pred_region
      _
    $region13: #{tpu_custom_call.1} parent=1 // pred_fallthru
      _
    // Predicated region
    $region14: #{tpu_custom_call.1} parent=1 // pred_check
      _
    $region15: #{tpu_custom_call.1} parent=1 // pred_check_branch
      %36 = sbr.rel (0) target = $region17
    $region16: #{tpu_custom_call.1} parent=1 // pred_region
      %37 = dma.done [#allocation3], 128
    $region17: #{tpu_custom_call.1} parent=1 // pred_fallthru
      _
    // Predicated region
    $region18: #{tpu_custom_call.1} parent=1 // pred_check
      _
    $region19: #{tpu_custom_call.1} parent=1 // pred_check_branch
      %39 = sbr.rel (0) target = $region21
    $region20: #{tpu_custom_call.1} parent=1 // pred_region
      %40 = dma.done [#allocation6], 256
    $region21: #{tpu_custom_call.1} parent=1 // pred_fallthru
      _
    %v41 = vld [vmem:[#allocation2] sm:$0xff]
    %v42 = vld [vmem:[#allocation5] sm:$0xff]
    %v43 = vld [vmem:[#allocation5 + $0x8] sm:$0xff]
    %v44 = vld [vmem:[%s2] sm:$0x1]
    %v46 = vlaneseq
    %v47 = vshrl.u32 %v46, 7
    %v48 = vsub.s32 0, %v47
    %v49 = vrot.slane %v44, %v48
    %vm51 = vcmask 130048
    %v53 = vsel %vm51, %v41, 0
    %55 = vmatprep.subr.mxu0 0.0
    %56 = vmatpush1.msra.mxu0 0.0
    %57 = vmatprep.subr.mxu0 0.0
    %58 = vmatpush1.msra.mxu0 0.0
    %59 = vmatprep.subr.mxu0 0.0
    %60 = vmatpush1.msra.mxu0 0.0
    %61 = vmatprep.subr.mxu0 0.0
    %62 = vmatpush1.msra.mxu0 0.0
    %63 = vmatprep.subr.mxu0 0.0
    %64 = vmatpush1.msra.mxu0 0.0
    %65 = vmatprep.subr.mxu0 0.0
    %66 = vmatpush1.msra.mxu0 0.0
    %67 = vmatprep.subr.mxu0 0.0
    %68 = vmatpush1.msra.mxu0 0.0
    %69 = vmatprep.subr.mxu0 0.0
    %70 = vmatpush1.msra.mxu0 0.0
    %71 = vmatprep.subr.mxu0 0.0
    %72 = vmatpush1.msra.mxu0 0.0
    %73 = vmatprep.subr.mxu0 0.0
    %74 = vmatpush1.msra.mxu0 0.0
    %75 = vmatprep.subr.mxu0 0.0
    %76 = vmatpush1.msra.mxu0 0.0
    %77 = vmatprep.subr.mxu0 0.0
    %78 = vmatpush1.msra.mxu0 0.0
    %79 = vmatprep.subr.mxu0 0.0
    %80 = vmatpush1.msra.mxu0 0.0
    %81 = vmatprep.subr.mxu0 0.0
    %82 = vmatpush1.msra.mxu0 0.0
    %83 = vmatprep.subr.mxu0 0.0
    %84 = vmatpush1.msra.mxu0 %v43
    %85 = vmatprep.subr.mxu0 0.0
    %86 = vmatpush1.msra.mxu0 %v42
    %87 = vmatprep.subr.mxu0 0.0
    %88 = vmatpush2.msra.mxu0 0.0
    %89 = vmatprep.subr.mxu0 0.0
    %90 = vmatpush2.msra.mxu0 0.0
    %91 = vmatprep.subr.mxu0 0.0
    %92 = vmatpush2.msra.mxu0 0.0
    %93 = vmatprep.subr.mxu0 0.0
    %94 = vmatpush2.msra.mxu0 0.0
    %95 = vmatprep.subr.mxu0 0.0
    %96 = vmatpush2.msra.mxu0 0.0
    %97 = vmatprep.subr.mxu0 0.0
    %98 = vmatpush2.msra.mxu0 0.0
    %99 = vmatprep.subr.mxu0 0.0
    %100 = vmatpush2.msra.mxu0 0.0
    %101 = vmatprep.subr.mxu0 0.0
    %102 = vmatpush2.msra.mxu0 0.0
    %103 = vmatprep.subr.mxu0 0.0
    %104 = vmatpush2.msra.mxu0 0.0
    %105 = vmatprep.subr.mxu0 0.0
    %106 = vmatpush2.msra.mxu0 0.0
    %107 = vmatprep.subr.mxu0 0.0
    %108 = vmatpush2.msra.mxu0 0.0
    %109 = vmatprep.subr.mxu0 0.0
    %110 = vmatpush2.msra.mxu0 0.0
    %111 = vmatprep.subr.mxu0 0.0
    %112 = vmatpush2.msra.mxu0 0.0
    %113 = vmatprep.subr.mxu0 0.0
    %114 = vmatpush2.msra.mxu0 0.0
    %115 = vmatprep.subr.mxu0 0.0
    %116 = vmatpush2.msra.mxu0 0.0
    %117 = vmatprep.subr.mxu0 0.0
    %118 = vmatpush2.msra.mxu0 0.0
    %119 = vmatprep.mubr.f32.mxu0 0.0
    %120 = vmatmul.mubr.f32.gmra.mxu0 %v53
    %v121 = vpop.f32.mrf.mxu0
    %v122 = vadd.f32 %v49, %v121
    %v123 = vpop.f32.mrf.mxu0
    %124 = vdwg.mxu0
    %125 = vst [vmem:[#allocation7] sm:$0xff] %v122
    // Predicated region
    $region22: #{tpu_custom_call.1} parent=1 // pred_check
      _
    $region23: #{tpu_custom_call.1} parent=1 // pred_check_branch
      %127 = sbr.rel (0) target = $region25
    $region24: #{tpu_custom_call.1} parent=1 // pred_region
      %s129 = ssub.s32 128, 128
      %130 = vsyncadd [#allocation4], %s129
      %s132 = sshll.u32 [#allocation7], 4
      %s133 = int_to_ptr.vmem [resolvable:$true] %s132
      %135 = dma.vmem_to_hbm [thread:$0]  %s133, 128, %s3, [#allocation4]
    $region25: #{tpu_custom_call.1} parent=1 // pred_fallthru
      _
    // Predicated region
    $region26: #{tpu_custom_call.1} parent=1 // pred_check
      _
    $region27: #{tpu_custom_call.1} parent=1 // pred_check_branch
      %137 = sbr.rel (0) target = $region29
    $region28: #{tpu_custom_call.1} parent=1 // pred_region
      %138 = dma.done [#allocation4], 128
    $region29: #{tpu_custom_call.1} parent=1 // pred_fallthru
      _
    %139 = vsyncpa [#allocation3], 1
    %140 = vsyncpa [#allocation6], 1
    %141 = vsyncpa [#allocation4], 1

</llo_original>
